<compile_context>
chip_gen: v5e
topology: v5e:2x2
jax: 0.10.0
libtpu: 0.0.40
codegen_flags: <defaults>
</compile_context>

<pallas_src>
import jax
import jax.numpy as jnp
from jax.experimental import pallas as pl
from jax.experimental.pallas import tpu as pltpu


def _lora_linear_kernel(x_ref, wT_ref, aT_ref, bT_ref, bias_ref,
                        o_ref, acc_ref, xa_ref):
    k = pl.program_id(2)

    @pl.when(k == 0)
    def _init():
        acc_ref[...] = jnp.zeros_like(acc_ref)
        xa_ref[...] = jnp.zeros_like(xa_ref)

    x = x_ref[...]                                                        # (tm, tk) bf16
    # Frozen base path: accumulate x @ W.T over the K grid axis (f32 acc on MXU).
    acc_ref[...] += jnp.dot(x, wT_ref[...], preferred_element_type=jnp.float32)
    # LoRA down-projection: accumulate x @ A.T (rank r) over K as well.
    xa_ref[...] += jnp.dot(x, aT_ref[...], preferred_element_type=jnp.float32)

    @pl.when(k == pl.num_programs(2) - 1)
    def _finalize():
        # LoRA up-projection; `scaling` is already folded into bT in the wrapper.
        lora = jnp.dot(xa_ref[...].astype(bT_ref.dtype), bT_ref[...],
                       preferred_element_type=jnp.float32)
        out = acc_ref[...] + lora + bias_ref[...]          # bias (1, tn) broadcasts
        o_ref[...] = out.astype(o_ref.dtype)


def prepare_lora_params(weight, bias, lora_A, lora_B, *, alpha, r,
                        compute_dtype=jnp.bfloat16):
    """One-time parameter prep (hoist out of the per-call hot path):
    transpose to (K, N) layout, fold `scaling` into lora_B.T, cast to bf16."""
    scaling = alpha / r
    wT = weight.T.astype(compute_dtype)                   # (in_f, out_f)
    aT = lora_A.T.astype(compute_dtype)                   # (in_f, r)
    bT = (lora_B.T * scaling).astype(compute_dtype)       # (r, out_f), scaling folded
    bias2d = bias.reshape(1, -1).astype(jnp.float32)      # (1, out_f)
    return wT, aT, bT, bias2d


def _choose_k_tile(in_f, target):
    """The K tile must evenly divide in_features (padded reduction blocks would
    accumulate garbage into valid outputs); prefer the largest lane-aligned
    divisor <= target, else fall back to the full reduction."""
    if in_f <= target:
        return in_f
    t = (min(target, in_f) // 128) * 128
    while t >= 128:
        if in_f % t == 0:
            return t
        t -= 128
    return in_f


def lora_linear(x, wT, aT, bT, bias2d, *, tm=128, tn=256, tk=512):
    """x: (batch, in_features) -> (batch, out_features).

    wT/aT/bT/bias2d come from `prepare_lora_params` (pre-transposed, bf16,
    scaling folded into bT)."""
    M, in_f = x.shape
    in_f_w, out_f = wT.shape
    r = aT.shape[1]
    assert in_f_w == in_f and aT.shape[0] == in_f
    assert bT.shape == (r, out_f) and bias2d.shape == (1, out_f)

    # Row tile: cover the whole (small) batch, otherwise a multiple of 8 sublanes.
    if M <= tm:
        tm = M
    else:
        assert tm % 8 == 0
    # Output-column tile: lane axis -> multiple of 128 unless it covers out_f fully.
    if out_f <= tn:
        tn = out_f
    else:
        assert tn % 128 == 0
    # Reduction tile: must divide in_features exactly (see _choose_k_tile).
    tk = _choose_k_tile(in_f, tk)

    grid = (pl.cdiv(M, tm), pl.cdiv(out_f, tn), in_f // tk)

    x_c = x.astype(wT.dtype)   # bf16 compute operand; output keeps x.dtype

    return pl.pallas_call(
        _lora_linear_kernel,
        out_shape=jax.ShapeDtypeStruct((M, out_f), x.dtype),
        grid_spec=pltpu.PrefetchScalarGridSpec(
            num_scalar_prefetch=0,
            grid=grid,
            in_specs=[
                pl.BlockSpec((tm, tk), lambda i, j, k: (i, k)),    # x tile
                pl.BlockSpec((tk, tn), lambda i, j, k: (k, j)),    # W.T tile
                pl.BlockSpec((tk, r),  lambda i, j, k: (k, 0)),    # A.T tile
                pl.BlockSpec((r, tn),  lambda i, j, k: (0, j)),    # B.T (pre-scaled)
                pl.BlockSpec((1, tn),  lambda i, j, k: (0, j)),    # bias tile
            ],
            out_specs=pl.BlockSpec((tm, tn), lambda i, j, k: (i, j)),
            scratch_shapes=[
                pltpu.VMEM((tm, tn), jnp.float32),   # base-path accumulator
                pltpu.VMEM((tm, r), jnp.float32),    # LoRA down-proj accumulator
            ],
        ),
        compiler_params=pltpu.CompilerParams(
            dimension_semantics=("parallel", "parallel", "arbitrary"),
        ),
    )(x_c, wT, aT, bT, bias2d)


if __name__ == "__main__":
    # Small, TPU-friendly shapes consistent with LoRALinear(in_features, out_features, r=8).
    batch, in_features, out_features, r, alpha = 64, 256, 384, 8, 1.0

    key = jax.random.PRNGKey(0)
    k_x, k_w, k_b, k_a, k_lb = jax.random.split(key, 5)

    x = jax.random.normal(k_x, (batch, in_features), dtype=jnp.float32)
    weight = jax.random.normal(k_w, (out_features, in_features), dtype=jnp.float32)
    bias = jax.random.normal(k_b, (out_features,), dtype=jnp.float32)
    lora_A = jax.random.normal(k_a, (r, in_features), dtype=jnp.float32) * 0.01
    lora_B = jax.random.normal(k_lb, (out_features, r), dtype=jnp.float32) * 0.01

    # One-time prep (transpose + scaling fold + bf16 cast), outside the hot path.
    wT, aT, bT, bias2d = prepare_lora_params(weight, bias, lora_A, lora_B,
                                             alpha=alpha, r=r)

    # tk=128 -> 2 K-steps (exercises the accumulator); tn=256 -> 2 N-tiles
    # (exercises lane-dense + partial-block output handling).
    out = lora_linear(x, wT, aT, bT, bias2d, tm=128, tn=256, tk=128)
    out = jax.block_until_ready(out)
    assert out.shape == (batch, out_features)

    scaling = alpha / r

    # Reference 1: same bf16-operand / f32-accumulate math as the kernel (tight check).
    xb = x.astype(jnp.bfloat16).astype(jnp.float32)
    wTb = weight.T.astype(jnp.bfloat16).astype(jnp.float32)
    aTb = lora_A.T.astype(jnp.bfloat16).astype(jnp.float32)
    bTb = (lora_B.T * scaling).astype(jnp.bfloat16).astype(jnp.float32)
    ref_bf16 = (xb @ aTb) @ bTb + xb @ wTb + bias
    assert jnp.allclose(out, ref_bf16, atol=3e-2, rtol=3e-2), \
        "mismatch vs bf16-math reference"

    # Reference 2: exact PyTorch forward semantics in f32 (loose check, bf16 rounding).
    ref_f32 = (x @ lora_A.T @ lora_B.T) * scaling + x @ weight.T + bias
    assert jnp.allclose(out, ref_f32, atol=0.6, rtol=5e-2), \
        "mismatch vs f32 reference"

    print("KERNEL_OK")
</pallas_src>

<mosaic_0001>
module attributes {stable_mosaic.version = 11 : i64} {
  func.func @_lora_linear_kernel(%arg0: i32, %arg1: i32, %arg2: i32, %arg3: memref<64x128xbf16, #tpu.memory_space<vmem>>, %arg4: memref<128x256xbf16, #tpu.memory_space<vmem>>, %arg5: memref<128x8xbf16, #tpu.memory_space<vmem>>, %arg6: memref<8x256xbf16, #tpu.memory_space<vmem>>, %arg7: memref<1x256xf32, #tpu.memory_space<vmem>>, %arg8: memref<64x256xf32, #tpu.memory_space<vmem>>, %arg9: memref<64x256xf32, #tpu.memory_space<vmem>>, %arg10: memref<64x8xf32, #tpu.memory_space<vmem>>) attributes {dimension_semantics = [#tpu.dimension_semantics<parallel>, #tpu.dimension_semantics<parallel>, #tpu.dimension_semantics<arbitrary>], iteration_bounds = array<i64: 1, 2, 2>, scalar_prefetch = 0 : i64, scratch_operands = 2 : i64, tpu.core_type = #tpu.core_type<tc>, window_params = [{transform_indices = @transform_0, window_bounds = array<i64: 64, 128>}, {transform_indices = @transform_1, window_bounds = array<i64: 128, 256>}, {transform_indices = @transform_2, window_bounds = array<i64: 128, 8>}, {transform_indices = @transform_3, window_bounds = array<i64: 8, 256>}, {transform_indices = @transform_4, window_bounds = array<i64: 1, 256>}, {transform_indices = @transform_5, window_bounds = array<i64: 64, 256>}]} {
    %c0_i32 = arith.constant 0 : i32
    %0 = arith.cmpi eq, %arg2, %c0_i32 : i32
    %1 = arith.extui %0 : i1 to i32
    %c0_i32_0 = arith.constant 0 : i32
    %2 = arith.cmpi ne, %1, %c0_i32_0 : i32
    scf.if %2 {
      %cst_16 = arith.constant 0.000000e+00 : f32
      %17 = vector.broadcast %cst_16 : f32 to vector<64x256xf32>
      %c0_17 = arith.constant 0 : index
      %c0_18 = arith.constant 0 : index
      %18 = vector.load %arg9[%c0_17, %c0_18] : memref<64x256xf32, #tpu.memory_space<vmem>>, vector<64x256xf32>
      tpu.vector_store %arg9[%c0_17, %c0_18], %17 {strides = array<i32>} : memref<64x256xf32, #tpu.memory_space<vmem>>, vector<64x256xf32>,
      %cst_19 = arith.constant 0.000000e+00 : f32
      %19 = vector.broadcast %cst_19 : f32 to vector<64x8xf32>
      %c0_20 = arith.constant 0 : index
      %c0_21 = arith.constant 0 : index
      %20 = vector.load %arg10[%c0_20, %c0_21] : memref<64x8xf32, #tpu.memory_space<vmem>>, vector<64x8xf32>
      tpu.vector_store %arg10[%c0_20, %c0_21], %19 {strides = array<i32>} : memref<64x8xf32, #tpu.memory_space<vmem>>, vector<64x8xf32>,
    } else {
    }
    %c0 = arith.constant 0 : index
    %c0_1 = arith.constant 0 : index
    %3 = vector.load %arg3[%c0, %c0_1] : memref<64x128xbf16, #tpu.memory_space<vmem>>, vector<64x128xbf16>
    %c0_2 = arith.constant 0 : index
    %c0_3 = arith.constant 0 : index
    %4 = vector.load %arg9[%c0_2, %c0_3] : memref<64x256xf32, #tpu.memory_space<vmem>>, vector<64x256xf32>
    %c0_4 = arith.constant 0 : index
    %c0_5 = arith.constant 0 : index
    %5 = vector.load %arg4[%c0_4, %c0_5] : memref<128x256xbf16, #tpu.memory_space<vmem>>, vector<128x256xbf16>
    %cst = arith.constant dense<0.000000e+00> : vector<64x256xf32>
    %6 = tpu.matmul %3, %5, %cst {dimension_numbers = #tpu.dot_dimension_numbers<[1], [0], [0], [1], [0, 0, 1, 1], [], []>} : vector<64x128xbf16>, vector<128x256xbf16>, vector<64x256xf32> -> vector<64x256xf32>
    %7 = arith.addf %4, %6 : vector<64x256xf32>
    %c0_6 = arith.constant 0 : index
    %c0_7 = arith.constant 0 : index
    %8 = vector.load %arg9[%c0_6, %c0_7] : memref<64x256xf32, #tpu.memory_space<vmem>>, vector<64x256xf32>
    tpu.vector_store %arg9[%c0_6, %c0_7], %7 {strides = array<i32>} : memref<64x256xf32, #tpu.memory_space<vmem>>, vector<64x256xf32>,
    %c0_8 = arith.constant 0 : index
    %c0_9 = arith.constant 0 : index
    %9 = vector.load %arg10[%c0_8, %c0_9] : memref<64x8xf32, #tpu.memory_space<vmem>>, vector<64x8xf32>
    %c0_10 = arith.constant 0 : index
    %c0_11 = arith.constant 0 : index
    %10 = vector.load %arg5[%c0_10, %c0_11] : memref<128x8xbf16, #tpu.memory_space<vmem>>, vector<128x8xbf16>
    %cst_12 = arith.constant dense<0.000000e+00> : vector<64x8xf32>
    %11 = tpu.matmul %3, %10, %cst_12 {dimension_numbers = #tpu.dot_dimension_numbers<[1], [0], [0], [1], [0, 0, 1, 1], [], []>} : vector<64x128xbf16>, vector<128x8xbf16>, vector<64x8xf32> -> vector<64x8xf32>
    %12 = arith.addf %9, %11 : vector<64x8xf32>
    %c0_13 = arith.constant 0 : index
    %c0_14 = arith.constant 0 : index
    %13 = vector.load %arg10[%c0_13, %c0_14] : memref<64x8xf32, #tpu.memory_space<vmem>>, vector<64x8xf32>
    tpu.vector_store %arg10[%c0_13, %c0_14], %12 {strides = array<i32>} : memref<64x8xf32, #tpu.memory_space<vmem>>, vector<64x8xf32>,
    %c1_i32 = arith.constant 1 : i32
    %14 = arith.cmpi eq, %arg2, %c1_i32 : i32
    %15 = arith.extui %14 : i1 to i32
    %c0_i32_15 = arith.constant 0 : i32
    %16 = arith.cmpi ne, %15, %c0_i32_15 : i32
    scf.if %16 {
      %c0_16 = arith.constant 0 : index
      %c0_17 = arith.constant 0 : index
      %17 = vector.load %arg10[%c0_16, %c0_17] : memref<64x8xf32, #tpu.memory_space<vmem>>, vector<64x8xf32>
      %18 = arith.truncf %17 : vector<64x8xf32> to vector<64x8xbf16>
      %c0_18 = arith.constant 0 : index
      %c0_19 = arith.constant 0 : index
      %19 = vector.load %arg6[%c0_18, %c0_19] : memref<8x256xbf16, #tpu.memory_space<vmem>>, vector<8x256xbf16>
      %cst_20 = arith.constant dense<0.000000e+00> : vector<64x256xf32>
      %20 = tpu.matmul %18, %19, %cst_20 {dimension_numbers = #tpu.dot_dimension_numbers<[1], [0], [0], [1], [0, 0, 1, 1], [], []>} : vector<64x8xbf16>, vector<8x256xbf16>, vector<64x256xf32> -> vector<64x256xf32>
      %c0_21 = arith.constant 0 : index
      %c0_22 = arith.constant 0 : index
      %21 = vector.load %arg9[%c0_21, %c0_22] : memref<64x256xf32, #tpu.memory_space<vmem>>, vector<64x256xf32>
      %22 = arith.addf %21, %20 : vector<64x256xf32>
      %c0_23 = arith.constant 0 : index
      %c0_24 = arith.constant 0 : index
      %23 = vector.load %arg7[%c0_23, %c0_24] : memref<1x256xf32, #tpu.memory_space<vmem>>, vector<1x256xf32>
      %24 = vector.broadcast %23 : vector<1x256xf32> to vector<64x256xf32>
      %25 = arith.addf %22, %24 : vector<64x256xf32>
      %c0_25 = arith.constant 0 : index
      %c0_26 = arith.constant 0 : index
      %26 = vector.load %arg8[%c0_25, %c0_26] : memref<64x256xf32, #tpu.memory_space<vmem>>, vector<64x256xf32>
      tpu.vector_store %arg8[%c0_25, %c0_26], %25 {strides = array<i32>} : memref<64x256xf32, #tpu.memory_space<vmem>>, vector<64x256xf32>,
    } else {
    }
    return
  }
  func.func @transform_0(%arg0: i32, %arg1: i32, %arg2: i32) -> (i32, i32) {
    %c0_i32 = arith.constant 0 : i32
    return %arg0, %arg2 : i32, i32
  }
  func.func @transform_1(%arg0: i32, %arg1: i32, %arg2: i32) -> (i32, i32) {
    %c0_i32 = arith.constant 0 : i32
    return %arg2, %arg1 : i32, i32
  }
  func.func @transform_2(%arg0: i32, %arg1: i32, %arg2: i32) -> (i32, i32) {
    %c0_i32 = arith.constant 0 : i32
    %c0_i32_0 = arith.constant 0 : i32
    return %arg2, %c0_i32 : i32, i32
  }
  func.func @transform_3(%arg0: i32, %arg1: i32, %arg2: i32) -> (i32, i32) {
    %c0_i32 = arith.constant 0 : i32
    %c0_i32_0 = arith.constant 0 : i32
    return %c0_i32, %arg1 : i32, i32
  }
  func.func @transform_4(%arg0: i32, %arg1: i32, %arg2: i32) -> (i32, i32) {
    %c0_i32 = arith.constant 0 : i32
    %c0_i32_0 = arith.constant 0 : i32
    return %c0_i32, %arg1 : i32, i32
  }
  func.func @transform_5(%arg0: i32, %arg1: i32, %arg2: i32) -> (i32, i32) {
    %c0_i32 = arith.constant 0 : i32
    return %arg0, %arg1 : i32, i32
  }
}

</mosaic_0001>

<llo_original>
// kernel: tpu_custom_call.1
$region0: #{tpu_custom_call.1}
  #allocation0 [shape = 'u32[]', space=smem, size = 0x4, offset = 0x4, fixed_abs, tag = 'smem constant byte address 0x4 - core index']
  #allocation1 [shape = 'u32[72,128]{1,0:T(1,128)}', space=vmem, size = 0x9000, scoped, tag = 'internal scratch']
  #allocation2 [shape = 'f32[64,256]{1,0:T(8,128)}', space=vmem, size = 0x10000, scoped, tag = 'scratch operand']
  #allocation3 [shape = 'f32[64,8]{1,0:T(8,128)}', space=vmem, size = 0x8000, scoped, tag = 'scratch operand']
  %s0 = inlined_call_operand.vmem [shape: bf16[64,256], index: 0, kind: input, shape index: {}]
  %s1 = inlined_call_operand.hbm [shape: bf16[256,384], index: 1, kind: input, shape index: {}]
  %s2 = inlined_call_operand.vmem [shape: bf16[256,8], index: 2, kind: input, shape index: {}]
  %s3 = inlined_call_operand.vmem [shape: bf16[8,384], index: 3, kind: input, shape index: {}]
  %s4 = inlined_call_operand.vmem [shape: f32[1,384], index: 4, kind: input, shape index: {}]
  %s5 = inlined_call_operand.hbm [shape: f32[64,384], index: 5, kind: output, shape index: {}]
  %s6 = sld [smem:[#allocation0]]
  $region106: #{tpu_custom_call.1} parent=0
    _
  %s8 = ssub.s32 1, %s6
  %s9 = scalar_select 0, %s8, %s6
  $region1: #{tpu_custom_call.1} parent=0
    #allocation4 [shape = 'u8[32768]{0}', space=vmem, size = 0x8000, scoped, tag = 'input window, operand 0']
    #allocation5 [shape = 'u8[131072]{0}', space=vmem, size = 0x20000, scoped, tag = 'input window, operand 1']
    #allocation6 [shape = 's32[2]{0}', space=sflag, size = 0x8, scoped, tag = 'scoped memory for tpu_custom_call.1']
    #allocation7 [shape = 's32[2]{0}', space=sflag, size = 0x8, scoped, tag = 'scoped memory for tpu_custom_call.1']
    #allocation8 [shape = 'u8[131072]{0}', space=vmem, size = 0x20000, scoped, tag = 'output window, operand 0']
    %10 = vsyncpa [#allocation6], 0
    %s11 = scalar_lea.sflag [#allocation6], 1
    %12 = vsyncpa %s11, 0
    %13 = vsyncpa [#allocation7], 0
    %s14 = scalar_lea.sflag [#allocation7], 1
    %15 = vsyncpa %s14, 0
    loop: start=0, step=1, limit=6
    $region2: #{tpu_custom_call.1} parent=1 // loop_pre_header
      _
    $region3: #{tpu_custom_call.1} parent=1 // loop_header
      %s17 = sphi 0, %s21
      %p18 = scmp.ge.s32.totalorder %s17, 6
      %s24 = sphi 0, %s43
      %s25 = sphi 0, %s39
      %s26 = sphi 0, %s35
      %s27 = sphi 0, %s24
      %s28 = sphi 0, %s25
      %s29 = sphi 0, %s26
      %s30 = sphi 0, %s27
      %s31 = sphi 0, %s28
      %s32 = sphi 0, %s29
      %s48 = sphi 0, %s50
      %s51 = sphi 0, %s48
      %s52 = sphi 0, %s51
      %s68 = sphi 0, %s52
      %s76 = sphi 0, %s78
      %s79 = sphi 0, %s76
      %s80 = sphi 0, %s79
      %s96 = sphi 0, %s80
      %s102 = sphi 0, %s104
      %s105 = sphi 0, %s102
      %s106 = sphi 0, %s105
      %s122 = sphi 0, %s106
      %s128 = sphi 0, %s130
      %s131 = sphi 0, %s128
      %s132 = sphi 0, %s131
      %s148 = sphi 0, %s132
      %s154 = sphi 0, %s156
      %s157 = sphi 0, %s154
      %s158 = sphi 0, %s157
      %s174 = sphi 0, %s158
      %s182 = sphi 0, %s184
      %s185 = sphi 0, %s182
      %s186 = sphi 0, %s185
      %s202 = sphi 0, %s186
    $region4: #{tpu_custom_call.1} parent=1 // loop_header_branch
      %20 = sbr.rel (%p18) target = $region8
    $region5: #{tpu_custom_call.1} parent=1 // loop_body
      %s22 = ssub.s32 %s17, 1
      %s23 = ssub.s32 %s17, 2
      %s33 = sadd.s32 1, %s26
      %p34 = scmp.ge.s32.totalorder %s33, 2
      %s35 = scalar_select %p34, 0, %s33
      %s36 = sadd.s32 1, %s25
      %s37 = scalar_select %p34, %s36, %s25
      %p38 = scmp.ge.s32.totalorder %s37, 2
      %s39 = scalar_select %p38, 0, %s37
      %s40 = sadd.s32 1, %s24
      %s41 = scalar_select %p38, %s40, %s24
      %p42 = scmp.ge.s32.totalorder %s41, 1
      %s43 = scalar_select %p42, 0, %s41
      %s44 = ssub.s32 %s24, %s43
      %s45 = ssub.s32 %s26, %s35
      %s46 = sor.u32 %s44, %s45
      %p47 = scmp.eq.s32.totalorder %s46, 0
      %s49 = sadd.s32 %s48, 1
      %s50 = scalar_select %p47, %s48, %s49
      %p53 = pneg %p47
      %p54 = scmp.eq.s32.totalorder %s17, 3
      %p55 = por %p53, %p54
      %p56 = scmp.ne.s32.totalorder %s48, %s51
      %p57 = scmp.eq.s32.totalorder %s17, 0
      %p58 = por %p56, %p57
      %p59 = scmp.ne.s32.totalorder %s48, %s51
      %p60 = scmp.eq.s32.totalorder %s22, 3
      %p61 = por %p59, %p60
      %p62 = scmp.ne.s32.totalorder %s51, %s52
      %p63 = scmp.eq.s32.totalorder %s22, 0
      %p64 = por %p62, %p63
      %p65 = scmp.ne.s32.totalorder %s51, %s52
      %p66 = scmp.eq.s32.totalorder %s23, 3
      %p67 = por %p65, %p66
      %p69 = scmp.ne.s32.totalorder %s52, %s68
      %p70 = scmp.eq.s32.totalorder %s23, 0
      %p71 = por %p69, %p70
      %s72 = ssub.s32 %s26, %s35
      %s73 = ssub.s32 %s25, %s39
      %s74 = sor.u32 %s72, %s73
      %p75 = scmp.eq.s32.totalorder %s74, 0
      %s77 = sadd.s32 %s76, 1
      %s78 = scalar_select %p75, %s76, %s77
      %p81 = pneg %p75
      %p82 = scmp.eq.s32.totalorder %s17, 3
      %p83 = por %p81, %p82
      %p84 = scmp.ne.s32.totalorder %s76, %s79
      %p85 = scmp.eq.s32.totalorder %s17, 0
      %p86 = por %p84, %p85
      %p87 = scmp.ne.s32.totalorder %s76, %s79
      %p88 = scmp.eq.s32.totalorder %s22, 3
      %p89 = por %p87, %p88
      %p90 = scmp.ne.s32.totalorder %s79, %s80
      %p91 = scmp.eq.s32.totalorder %s22, 0
      %p92 = por %p90, %p91
      %p93 = scmp.ne.s32.totalorder %s79, %s80
      %p94 = scmp.eq.s32.totalorder %s23, 3
      %p95 = por %p93, %p94
      %p97 = scmp.ne.s32.totalorder %s80, %s96
      %p98 = scmp.eq.s32.totalorder %s23, 0
      %p99 = por %p97, %p98
      %s100 = ssub.s32 %s26, %s35
      %p101 = scmp.eq.s32.totalorder %s100, 0
      %s103 = sadd.s32 %s102, 1
      %s104 = scalar_select %p101, %s102, %s103
      %p107 = pneg %p101
      %p108 = scmp.eq.s32.totalorder %s17, 3
      %p109 = por %p107, %p108
      %p110 = scmp.ne.s32.totalorder %s102, %s105
      %p111 = scmp.eq.s32.totalorder %s17, 0
      %p112 = por %p110, %p111
      %p113 = scmp.ne.s32.totalorder %s102, %s105
      %p114 = scmp.eq.s32.totalorder %s22, 3
      %p115 = por %p113, %p114
      %p116 = scmp.ne.s32.totalorder %s105, %s106
      %p117 = scmp.eq.s32.totalorder %s22, 0
      %p118 = por %p116, %p117
      %p119 = scmp.ne.s32.totalorder %s105, %s106
      %p120 = scmp.eq.s32.totalorder %s23, 3
      %p121 = por %p119, %p120
      %p123 = scmp.ne.s32.totalorder %s106, %s122
      %p124 = scmp.eq.s32.totalorder %s23, 0
      %p125 = por %p123, %p124
      %s126 = ssub.s32 %s25, %s39
      %p127 = scmp.eq.s32.totalorder %s126, 0
      %s129 = sadd.s32 %s128, 1
      %s130 = scalar_select %p127, %s128, %s129
      %p133 = pneg %p127
      %p134 = scmp.eq.s32.totalorder %s17, 3
      %p135 = por %p133, %p134
      %p136 = scmp.ne.s32.totalorder %s128, %s131
      %p137 = scmp.eq.s32.totalorder %s17, 0
      %p138 = por %p136, %p137
      %p139 = scmp.ne.s32.totalorder %s128, %s131
      %p140 = scmp.eq.s32.totalorder %s22, 3
      %p141 = por %p139, %p140
      %p142 = scmp.ne.s32.totalorder %s131, %s132
      %p143 = scmp.eq.s32.totalorder %s22, 0
      %p144 = por %p142, %p143
      %p145 = scmp.ne.s32.totalorder %s131, %s132
      %p146 = scmp.eq.s32.totalorder %s23, 3
      %p147 = por %p145, %p146
      %p149 = scmp.ne.s32.totalorder %s132, %s148
      %p150 = scmp.eq.s32.totalorder %s23, 0
      %p151 = por %p149, %p150
      %s152 = ssub.s32 %s25, %s39
      %p153 = scmp.eq.s32.totalorder %s152, 0
      %s155 = sadd.s32 %s154, 1
      %s156 = scalar_select %p153, %s154, %s155
      %p159 = pneg %p153
      %p160 = scmp.eq.s32.totalorder %s17, 3
      %p161 = por %p159, %p160
      %p162 = scmp.ne.s32.totalorder %s154, %s157
      %p163 = scmp.eq.s32.totalorder %s17, 0
      %p164 = por %p162, %p163
      %p165 = scmp.ne.s32.totalorder %s154, %s157
      %p166 = scmp.eq.s32.totalorder %s22, 3
      %p167 = por %p165, %p166
      %p168 = scmp.ne.s32.totalorder %s157, %s158
      %p169 = scmp.eq.s32.totalorder %s22, 0
      %p170 = por %p168, %p169
      %p171 = scmp.ne.s32.totalorder %s157, %s158
      %p172 = scmp.eq.s32.totalorder %s23, 3
      %p173 = por %p171, %p172
      %p175 = scmp.ne.s32.totalorder %s158, %s174
      %p176 = scmp.eq.s32.totalorder %s23, 0
      %p177 = por %p175, %p176
      %s178 = ssub.s32 %s24, %s43
      %s179 = ssub.s32 %s25, %s39
      %s180 = sor.u32 %s178, %s179
      %p181 = scmp.eq.s32.totalorder %s180, 0
      %s183 = sadd.s32 %s182, 1
      %s184 = scalar_select %p181, %s182, %s183
      %p187 = pneg %p181
      %p188 = scmp.eq.s32.totalorder %s17, 3
      %p189 = por %p187, %p188
      %p190 = scmp.ne.s32.totalorder %s182, %s185
      %p191 = scmp.eq.s32.totalorder %s17, 0
      %p192 = por %p190, %p191
      %p193 = scmp.ne.s32.totalorder %s182, %s185
      %p194 = scmp.eq.s32.totalorder %s22, 3
      %p195 = por %p193, %p194
      %p196 = scmp.ne.s32.totalorder %s185, %s186
      %p197 = scmp.eq.s32.totalorder %s22, 0
      %p198 = por %p196, %p197
      %p199 = scmp.ne.s32.totalorder %s185, %s186
      %p200 = scmp.eq.s32.totalorder %s23, 3
      %p201 = por %p199, %p200
      %p203 = scmp.ne.s32.totalorder %s186, %s202
      %p204 = scmp.eq.s32.totalorder %s23, 0
      %p205 = por %p203, %p204
      %p206 = scmp.le.s32.totalorder 1, %s17
      %p207 = scmp.lt.s32.totalorder %s17, 5
      %p208 = pnand %p206, %p207
      %p209 = pneg %p208
      // Predicated region
      $region9: #{tpu_custom_call.1} parent=5 // pred_check
        _
      $region10: #{tpu_custom_call.1} parent=5 // pred_check_branch
        %211 = sbr.rel (%p208) target = $region12
      $region11: #{tpu_custom_call.1} parent=5 // pred_region
        %s212 = ssub.s32 %s17, 1
      $region12: #{tpu_custom_call.1} parent=5 // pred_fallthru
        _
      %p213 = scmp.lt.s32.totalorder %s17, 4
      // Predicated region
      $region13: #{tpu_custom_call.1} parent=5 // pred_check
        %p214 = pneg %p213
      $region14: #{tpu_custom_call.1} parent=5 // pred_check_branch
        %216 = sbr.rel (%p214) target = $region16
      $region15: #{tpu_custom_call.1} parent=5 // pred_region
        // Predicated region
        $region17: #{tpu_custom_call.1} parent=15 // pred_check
          %p217 = pneg %p58
        $region18: #{tpu_custom_call.1} parent=15 // pred_check_branch
          %219 = sbr.rel (%p217) target = $region20
        $region19: #{tpu_custom_call.1} parent=15 // pred_region
          %s220 = sand.u32 %s48, 1
          %s221 = sand.u32 %s48, 1
          %s222 = smul.addr %s221, 32
          %s223 = scalar_lea.vmem [#allocation4], %s222
          %s224 = smul.u32 8, %s24
          %s225 = smul.addr %s224, 2
          %s226 = sadd.s32 %s26, %s225
          %s227 = smul.addr %s226, 4
          %s228 = scalar_lea.vmem %s0, %s227
          // Predicated region
          $region21: #{tpu_custom_call.1} parent=19 // pred_check
            _
          $region22: #{tpu_custom_call.1} parent=19 // pred_check_branch
            %230 = sbr.rel (0) target = $region24
          $region23: #{tpu_custom_call.1} parent=19 // pred_region
            // Predicated region
            $region25: #{tpu_custom_call.1} parent=23 // pred_check
              _
            $region26: #{tpu_custom_call.1} parent=23 // pred_check_branch
              %232 = sbr.rel target = $region28
            $region27: #{tpu_custom_call.1} parent=23 // pred_region
              // Predicated region
              $region40: #{tpu_custom_call.1} parent=27 // pred_check
                _
              $region41: #{tpu_custom_call.1} parent=27 // pred_check_branch
                %262 = sbr.rel (0) target = $region43
              $region42: #{tpu_custom_call.1} parent=27 // pred_region
                loop: start=0, step=1, limit=1
                $region44: #{tpu_custom_call.1} parent=42 // loop_pre_header
                  _
                $region45: #{tpu_custom_call.1} parent=42 // loop_header
                  %s264 = sphi 0, %s268
                  %p265 = scmp.ge.s32.totalorder %s264, 1
                  %s269 = sphi %s228, %s228
                  %s270 = sphi %s223, %s223
                $region46: #{tpu_custom_call.1} parent=42 // loop_header_branch
                  %267 = sbr.rel (%p265) target = $region50
                $region47: #{tpu_custom_call.1} parent=42 // loop_body
                  _
                $region48: #{tpu_custom_call.1} parent=42 // loop_footer
                  %s268 = sadd.s32 1, %s264
                $region49: #{tpu_custom_call.1} parent=42 // loop_footer_branch
                  %263 = sbr.rel target = $region45
                $region50: #{tpu_custom_call.1} parent=42 // loop_exit
                  _
                %s272 = ssub.s32 16, 1
                loop: start=0, step=1, limit=1
                $region51: #{tpu_custom_call.1} parent=42 // loop_pre_header
                  _
                $region52: #{tpu_custom_call.1} parent=42 // loop_header
                  %s274 = sphi 0, %s278
                  %p275 = scmp.ge.s32.totalorder %s274, 1
                  %s279 = sphi %s228, %s228
                  %s280 = sphi %s223, %s223
                $region53: #{tpu_custom_call.1} parent=42 // loop_header_branch
                  %277 = sbr.rel (%p275) target = $region57
                $region54: #{tpu_custom_call.1} parent=42 // loop_body
                  %v281 = vld [vmem:[%s279] sm:%s272]
                  %282 = vst [vmem:[%s280] sm:%s272] %v281
                  %v283 = vld [vmem:[%s279 + $0x8] sm:%s272]
                  %284 = vst [vmem:[%s280 + $0x4] sm:%s272] %v283
                  %v285 = vld [vmem:[%s279 + $0x10] sm:%s272]
                  %286 = vst [vmem:[%s280 + $0x8] sm:%s272] %v285
                  %v287 = vld [vmem:[%s279 + $0x18] sm:%s272]
                  %288 = vst [vmem:[%s280 + $0xc] sm:%s272] %v287
                  %v289 = vld [vmem:[%s279 + $0x20] sm:%s272]
                  %290 = vst [vmem:[%s280 + $0x10] sm:%s272] %v289
                  %v291 = vld [vmem:[%s279 + $0x28] sm:%s272]
                  %292 = vst [vmem:[%s280 + $0x14] sm:%s272] %v291
                  %v293 = vld [vmem:[%s279 + $0x30] sm:%s272]
                  %294 = vst [vmem:[%s280 + $0x18] sm:%s272] %v293
                  %v295 = vld [vmem:[%s279 + $0x38] sm:%s272]
                  %296 = vst [vmem:[%s280 + $0x1c] sm:%s272] %v295
                $region55: #{tpu_custom_call.1} parent=42 // loop_footer
                  %s278 = sadd.s32 1, %s274
                $region56: #{tpu_custom_call.1} parent=42 // loop_footer_branch
                  %273 = sbr.rel target = $region52
                $region57: #{tpu_custom_call.1} parent=42 // loop_exit
                  _
              $region43: #{tpu_custom_call.1} parent=27 // pred_fallthru
                _
            $region28: #{tpu_custom_call.1} parent=23 // pred_fallthru
              _
            // Predicated region
            $region29: #{tpu_custom_call.1} parent=23 // pred_check
              _
            $region30: #{tpu_custom_call.1} parent=23 // pred_check_branch
              %234 = sbr.rel (0) target = $region32
            $region31: #{tpu_custom_call.1} parent=23 // pred_region
              %s236 = ssub.s32 16, 1
              loop: start=0, step=1, limit=1
              $region33: #{tpu_custom_call.1} parent=31 // loop_pre_header
                _
              $region34: #{tpu_custom_call.1} parent=31 // loop_header
                %s238 = sphi 0, %s242
                %p239 = scmp.ge.s32.totalorder %s238, 1
                %s243 = sphi %s228, %s228
                %s244 = sphi %s223, %s223
              $region35: #{tpu_custom_call.1} parent=31 // loop_header_branch
                %241 = sbr.rel (%p239) target = $region39
              $region36: #{tpu_custom_call.1} parent=31 // loop_body
                %v245 = vld [vmem:[%s243] sm:%s236]
                %246 = vst [vmem:[%s244] sm:%s236] %v245
                %v247 = vld [vmem:[%s243 + $0x8] sm:%s236]
                %248 = vst [vmem:[%s244 + $0x4] sm:%s236] %v247
                %v249 = vld [vmem:[%s243 + $0x10] sm:%s236]
                %250 = vst [vmem:[%s244 + $0x8] sm:%s236] %v249
                %v251 = vld [vmem:[%s243 + $0x18] sm:%s236]
                %252 = vst [vmem:[%s244 + $0xc] sm:%s236] %v251
                %v253 = vld [vmem:[%s243 + $0x20] sm:%s236]
                %254 = vst [vmem:[%s244 + $0x10] sm:%s236] %v253
                %v255 = vld [vmem:[%s243 + $0x28] sm:%s236]
                %256 = vst [vmem:[%s244 + $0x14] sm:%s236] %v255
                %v257 = vld [vmem:[%s243 + $0x30] sm:%s236]
                %258 = vst [vmem:[%s244 + $0x18] sm:%s236] %v257
                %v259 = vld [vmem:[%s243 + $0x38] sm:%s236]
                %260 = vst [vmem:[%s244 + $0x1c] sm:%s236] %v259
              $region37: #{tpu_custom_call.1} parent=31 // loop_footer
                %s242 = sadd.s32 1, %s238
              $region38: #{tpu_custom_call.1} parent=31 // loop_footer_branch
                %237 = sbr.rel target = $region34
              $region39: #{tpu_custom_call.1} parent=31 // loop_exit
                _
            $region32: #{tpu_custom_call.1} parent=23 // pred_fallthru
              _
          $region24: #{tpu_custom_call.1} parent=19 // pred_fallthru
            _
          %297 = vnop
        $region20: #{tpu_custom_call.1} parent=15 // pred_fallthru
          _
        // Predicated region
        $region58: #{tpu_custom_call.1} parent=15 // pred_check
          %p298 = pneg %p86
        $region59: #{tpu_custom_call.1} parent=15 // pred_check_branch
          %300 = sbr.rel (%p298) target = $region61
        $region60: #{tpu_custom_call.1} parent=15 // pred_region
          %s301 = sand.u32 %s76, 1
          %s302 = scalar_lea.sflag [#allocation6], %s301
          %s303 = sand.u32 %s76, 1
          %s304 = smul.addr %s303, 128
          %s305 = scalar_lea.vmem [#allocation5], %s304
          %s306 = smul.u32 16, %s26
          %s307 = smul.u32 2, %s25
          %s308 = ssub.s32 3, %s307
          %p309 = scmp.lt.s32.totalorder %s308, 2
          %s310 = scalar_select %p309, %s308, 2
          %s311 = smul.u32 64, %s310
          %s312 = ssub.s32 128, %s311
          %s313 = sshll.u32 %s312, 4
          %314 = vsyncadd %s302, %s313
          %p315 = scmp.ne.s32.totalorder 0, %s311
          %s316 = smul.addr %s306, 3
          %s317 = sadd.s32 %s307, %s316
          %s318 = smul.addr %s317, 4
          %s319 = scalar_lea.hbm %s1, %s318
          %s320 = smul.u32 %s310, 4
          %s321 = smul.u32 %s320, 16
          %s322 = sshll.u32 %s319, 4
          %s323 = int_to_ptr.hbm [resolvable:$true] %s322
          %s324 = sshll.u32 %s305, 4
          %s325 = int_to_ptr.vmem [resolvable:$true] %s324
          %s326 = sshll.u32 %s321, 4
          %330 = dma.hbm_to_vmem [thread:$0]  (%p315), %s323, %s326, %s325, %s302, 192, 128, %s320
        $region61: #{tpu_custom_call.1} parent=15 // pred_fallthru
          _
        // Predicated region
        $region62: #{tpu_custom_call.1} parent=15 // pred_check
          %p331 = pneg %p112
        $region63: #{tpu_custom_call.1} parent=15 // pred_check_branch
          %333 = sbr.rel (%p331) target = $region65
        $region64: #{tpu_custom_call.1} parent=15 // pred_region
          %s334 = smul.u32 16, %s26
          %p335 = scmp.lt.s32.totalorder %s334, 31
          %s336 = scalar_select %p335, %s334, 31
          %s337 = smul.addr %s336, 4
          %s338 = scalar_lea.vmem %s2, %s337
          %s339 = smul.u32 16, %s26
        $region65: #{tpu_custom_call.1} parent=15 // pred_fallthru
          _
        // Predicated region
        $region66: #{tpu_custom_call.1} parent=15 // pred_check
          %p340 = pneg %p138
        $region67: #{tpu_custom_call.1} parent=15 // pred_check_branch
          %342 = sbr.rel (%p340) target = $region69
        $region68: #{tpu_custom_call.1} parent=15 // pred_region
          %s343 = smul.u32 2, %s25
          %s344 = ssub.s32 3, %s343
          %p345 = scmp.lt.s32.totalorder %s344, 2
          %s346 = scalar_select %p345, %s344, 2
          %s347 = smul.u32 4, %s346
          %p348 = scmp.lt.s32.totalorder %s343, 2
          %s349 = scalar_select %p348, %s343, 2
          %s350 = smul.addr %s349, 4
          %s351 = scalar_lea.vmem %s3, %s350
          %s352 = smul.u32 2, %s25
          %s353 = ssub.s32 3, %s352
          %p354 = scmp.lt.s32.totalorder %s353, 2
          %s355 = scalar_select %p354, %s353, 2
          %s356 = smul.u32 4, %s355
        $region69: #{tpu_custom_call.1} parent=15 // pred_fallthru
          _
        // Predicated region
        $region70: #{tpu_custom_call.1} parent=15 // pred_check
          %p357 = pneg %p164
        $region71: #{tpu_custom_call.1} parent=15 // pred_check_branch
          %359 = sbr.rel (%p357) target = $region73
        $region72: #{tpu_custom_call.1} parent=15 // pred_region
          %s360 = smul.u32 2, %s25
          %s361 = ssub.s32 3, %s360
          %p362 = scmp.lt.s32.totalorder %s361, 2
          %s363 = scalar_select %p362, %s361, 2
          %p364 = scmp.lt.s32.totalorder %s360, 2
          %s365 = scalar_select %p364, %s360, 2
          %s366 = scalar_lea.vmem %s4, %s365
          %s367 = smul.u32 2, %s25
          %s368 = ssub.s32 3, %s367
          %p369 = scmp.lt.s32.totalorder %s368, 2
          %s370 = scalar_select %p369, %s368, 2
        $region73: #{tpu_custom_call.1} parent=15 // pred_fallthru
          _
      $region16: #{tpu_custom_call.1} parent=5 // pred_fallthru
        _
      %p371 = scmp.le.s32.totalorder 1, %s17
      %p372 = scmp.lt.s32.totalorder %s17, 5
      %p373 = pnand %p371, %p372
      %p374 = pneg %p373
      // Predicated region
      $region74: #{tpu_custom_call.1} parent=5 // pred_check
        _
      $region75: #{tpu_custom_call.1} parent=5 // pred_check_branch
        %376 = sbr.rel (%p373) target = $region77
      $region76: #{tpu_custom_call.1} parent=5 // pred_region
        %s377 = ssub.s32 %s17, 1
        %s378 = sand.u32 %s51, 1
        %s379 = sand.u32 %s51, 1
        %s380 = smul.addr %s379, 32
        %s381 = scalar_lea.vmem [#allocation4], %s380
        // Predicated region
        $region78: #{tpu_custom_call.1} parent=76 // pred_check
          %p382 = pneg %p64
        $region79: #{tpu_custom_call.1} parent=76 // pred_check_branch
          %384 = sbr.rel (%p382) target = $region81
        $region80: #{tpu_custom_call.1} parent=76 // pred_region
          _
        $region81: #{tpu_custom_call.1} parent=76 // pred_fallthru
          _
        %s385 = sand.u32 %s79, 1
        %s386 = scalar_lea.sflag [#allocation6], %s385
        %s387 = sand.u32 %s79, 1
        %s388 = smul.addr %s387, 128
        %s389 = scalar_lea.vmem [#allocation5], %s388
        // Predicated region
        $region82: #{tpu_custom_call.1} parent=76 // pred_check
          %p390 = pneg %p92
        $region83: #{tpu_custom_call.1} parent=76 // pred_check_branch
          %392 = sbr.rel (%p390) target = $region85
        $region84: #{tpu_custom_call.1} parent=76 // pred_region
          %394 = dma.done %s386, 2048
        $region85: #{tpu_custom_call.1} parent=76 // pred_fallthru
          _
        %s395 = sand.u32 %s51, 1
        %s396 = sand.u32 %s51, 1
        %s397 = smul.addr %s396, 32
        %s398 = scalar_lea.vmem [#allocation4], %s397
        %p399 = pneg %p64
        %p400 = pneg %p61
        %s401 = sand.u32 %s79, 1
        %s402 = scalar_lea.sflag [#allocation6], %s401
        %s403 = sand.u32 %s79, 1
        %s404 = smul.addr %s403, 128
        %s405 = scalar_lea.vmem [#allocation5], %s404
        %p406 = pneg %p92
        %p407 = pneg %p89
        %s408 = smul.u32 16, %s29
        %p409 = scmp.lt.s32.totalorder %s408, 31
        %s410 = scalar_select %p409, %s408, 31
        %s411 = smul.addr %s410, 4
        %s412 = scalar_lea.vmem %s2, %s411
        %p413 = pneg %p118
        %p414 = pneg %p115
        %s415 = smul.u32 2, %s28
        %s416 = ssub.s32 3, %s415
        %p417 = scmp.lt.s32.totalorder %s416, 2
        %s418 = scalar_select %p417, %s416, 2
        %s419 = smul.u32 4, %s418
        %p420 = scmp.lt.s32.totalorder %s415, 2
        %s421 = scalar_select %p420, %s415, 2
        %s422 = smul.addr %s421, 4
        %s423 = scalar_lea.vmem %s3, %s422
        %p424 = pneg %p144
        %p425 = pneg %p141
        %s426 = smul.u32 2, %s28
        %s427 = ssub.s32 3, %s426
        %p428 = scmp.lt.s32.totalorder %s427, 2
        %s429 = scalar_select %p428, %s427, 2
        %p430 = scmp.lt.s32.totalorder %s426, 2
        %s431 = scalar_select %p430, %s426, 2
        %s432 = scalar_lea.vmem %s4, %s431
        %p433 = pneg %p170
        %p434 = pneg %p167
        %p435 = pneg %p198
        %p436 = pneg %p195
        %s437 = sand.u32 %s185, 1
        %s438 = scalar_lea.sflag [#allocation7], %s437
        %s439 = sand.u32 %s185, 1
        %s440 = smul.addr %s439, 128
        %s441 = scalar_lea.vmem [#allocation8], %s440
        %s442 = smul.u32 8, %s27
        %s443 = smul.u32 16, %s29
        %s444 = smul.u32 2, %s28
        %s445 = ssub.s32 3, %s444
        %p446 = scmp.lt.s32.totalorder %s445, 2
        %s447 = scalar_select %p446, %s445, 2
        %s448 = smul.u32 64, %s447
        %s449 = smul.u32 16, %s29
        %p450 = scmp.lt.s32.totalorder %s449, 31
        %s451 = scalar_select %p450, %s449, 31
        %s452 = smul.addr %s451, 4
        %s453 = scalar_lea.vmem %s2, %s452
        %s454 = smul.u32 16, %s29
        %s455 = smul.u32 2, %s28
        %s456 = ssub.s32 3, %s455
        %p457 = scmp.lt.s32.totalorder %s456, 2
        %s458 = scalar_select %p457, %s456, 2
        %s459 = smul.u32 4, %s458
        %p460 = scmp.lt.s32.totalorder %s455, 2
        %s461 = scalar_select %p460, %s455, 2
        %s462 = smul.addr %s461, 4
        %s463 = scalar_lea.vmem %s3, %s462
        %s464 = smul.u32 2, %s28
        %s465 = ssub.s32 3, %s464
        %p466 = scmp.lt.s32.totalorder %s465, 2
        %s467 = scalar_select %p466, %s465, 2
        %s468 = smul.u32 4, %s467
        %s469 = smul.u32 2, %s28
        %s470 = ssub.s32 3, %s469
        %p471 = scmp.lt.s32.totalorder %s470, 2
        %s472 = scalar_select %p471, %s470, 2
        %p473 = scmp.lt.s32.totalorder %s469, 2
        %s474 = scalar_select %p473, %s469, 2
        %s475 = scalar_lea.vmem %s4, %s474
        %s476 = smul.u32 2, %s28
        %s477 = ssub.s32 3, %s476
        %p478 = scmp.lt.s32.totalorder %s477, 2
        %s479 = scalar_select %p478, %s477, 2
        %s480 = smul.u32 8, %s27
        %s481 = smul.u32 2, %s28
        %s482 = ssub.s32 3, %s481
        %p483 = scmp.lt.s32.totalorder %s482, 2
        %s484 = scalar_select %p483, %s482, 2
        %s485 = smul.u32 64, %s484
        %p487 = scmp.eq.s32.totalorder %s29, 0
        // Predicated region
        $region86: #{tpu_custom_call.1} parent=76 // pred_check
          %p488 = pneg %p487
        $region87: #{tpu_custom_call.1} parent=76 // pred_check_branch
          %490 = sbr.rel (%p488) target = $region89
        $region88: #{tpu_custom_call.1} parent=76 // pred_region
          %491 = vst [vmem:[#allocation2] sm:$0xff] 0.0
          %492 = vst [vmem:[#allocation2 + $0x8] sm:$0xff] 0.0
          %493 = vst [vmem:[#allocation2 + $0x10] sm:$0xff] 0.0
          %494 = vst [vmem:[#allocation2 + $0x18] sm:$0xff] 0.0
          %495 = vst [vmem:[#allocation2 + $0x20] sm:$0xff] 0.0
          %496 = vst [vmem:[#allocation2 + $0x28] sm:$0xff] 0.0
          %497 = vst [vmem:[#allocation2 + $0x30] sm:$0xff] 0.0
          %498 = vst [vmem:[#allocation2 + $0x38] sm:$0xff] 0.0
          %499 = vst [vmem:[#allocation2 + $0x40] sm:$0xff] 0.0
          %500 = vst [vmem:[#allocation2 + $0x48] sm:$0xff] 0.0
          %501 = vst [vmem:[#allocation2 + $0x50] sm:$0xff] 0.0
          %502 = vst [vmem:[#allocation2 + $0x58] sm:$0xff] 0.0
          %503 = vst [vmem:[#allocation2 + $0x60] sm:$0xff] 0.0
          %504 = vst [vmem:[#allocation2 + $0x68] sm:$0xff] 0.0
          %505 = vst [vmem:[#allocation2 + $0x70] sm:$0xff] 0.0
          %506 = vst [vmem:[#allocation2 + $0x78] sm:$0xff] 0.0
          %vm507 = vcmask 64512
          %508 = vst.msk [vmem:[#allocation3] sm:$0xff] %vm507, 0.0
          %509 = vst.msk [vmem:[#allocation3 + $0x8] sm:$0xff] %vm507, 0.0
          %510 = vst.msk [vmem:[#allocation3 + $0x10] sm:$0xff] %vm507, 0.0
          %511 = vst.msk [vmem:[#allocation3 + $0x18] sm:$0xff] %vm507, 0.0
          %512 = vst.msk [vmem:[#allocation3 + $0x20] sm:$0xff] %vm507, 0.0
          %513 = vst.msk [vmem:[#allocation3 + $0x28] sm:$0xff] %vm507, 0.0
          %514 = vst.msk [vmem:[#allocation3 + $0x30] sm:$0xff] %vm507, 0.0
          %515 = vst.msk [vmem:[#allocation3 + $0x38] sm:$0xff] %vm507, 0.0
        $region89: #{tpu_custom_call.1} parent=76 // pred_fallthru
          _
        %v516 = vld [vmem:[%s381] sm:$0xf]
        %v517 = vld [vmem:[%s381 + $0x4] sm:$0xf]
        %v518 = vld [vmem:[%s381 + $0x8] sm:$0xf]
        %v519 = vld [vmem:[%s381 + $0xc] sm:$0xf]
        %v520 = vld [vmem:[%s381 + $0x10] sm:$0xf]
        %v521 = vld [vmem:[%s381 + $0x14] sm:$0xf]
        %v522 = vld [vmem:[%s381 + $0x18] sm:$0xf]
        %v523 = vld [vmem:[%s381 + $0x1c] sm:$0xf]
        %v524 = vld [vmem:[#allocation2] sm:$0xff]
        %v525 = vld [vmem:[#allocation2 + $0x8] sm:$0xff]
        %v526 = vld [vmem:[#allocation2 + $0x10] sm:$0xff]
        %v527 = vld [vmem:[#allocation2 + $0x18] sm:$0xff]
        %v528 = vld [vmem:[#allocation2 + $0x20] sm:$0xff]
        %v529 = vld [vmem:[#allocation2 + $0x28] sm:$0xff]
        %v530 = vld [vmem:[#allocation2 + $0x30] sm:$0xff]
        %v531 = vld [vmem:[#allocation2 + $0x38] sm:$0xff]
        %v532 = vld [vmem:[#allocation2 + $0x40] sm:$0xff]
        %v533 = vld [vmem:[#allocation2 + $0x48] sm:$0xff]
        %v534 = vld [vmem:[#allocation2 + $0x50] sm:$0xff]
        %v535 = vld [vmem:[#allocation2 + $0x58] sm:$0xff]
        %v536 = vld [vmem:[#allocation2 + $0x60] sm:$0xff]
        %v537 = vld [vmem:[#allocation2 + $0x68] sm:$0xff]
        %v538 = vld [vmem:[#allocation2 + $0x70] sm:$0xff]
        %v539 = vld [vmem:[#allocation2 + $0x78] sm:$0xff]
        %v540 = vld [vmem:[%s389] sm:$0xff]
        %v541 = vld [vmem:[%s389 + $0x8] sm:$0xff]
        %v542 = vld [vmem:[%s389 + $0x10] sm:$0xff]
        %v543 = vld [vmem:[%s389 + $0x18] sm:$0xff]
        %v544 = vld [vmem:[%s389 + $0x20] sm:$0xff]
        %v545 = vld [vmem:[%s389 + $0x28] sm:$0xff]
        %v546 = vld [vmem:[%s389 + $0x30] sm:$0xff]
        %v547 = vld [vmem:[%s389 + $0x38] sm:$0xff]
        %v548 = vld [vmem:[%s389 + $0x40] sm:$0xff]
        %v549 = vld [vmem:[%s389 + $0x48] sm:$0xff]
        %v550 = vld [vmem:[%s389 + $0x50] sm:$0xff]
        %v551 = vld [vmem:[%s389 + $0x58] sm:$0xff]
        %v552 = vld [vmem:[%s389 + $0x60] sm:$0xff]
        %v553 = vld [vmem:[%s389 + $0x68] sm:$0xff]
        %v554 = vld [vmem:[%s389 + $0x70] sm:$0xff]
        %v555 = vld [vmem:[%s389 + $0x78] sm:$0xff]
        %v564 = vunpack.c.l.b16 %v516
        %v565 = vunpack.c.l.b16 %v517
        %v566 = vunpack.c.l.b16 %v518
        %v567 = vunpack.c.l.b16 %v519
        %v568 = vunpack.c.l.b16 %v520
        %v569 = vunpack.c.l.b16 %v521
        %v570 = vunpack.c.l.b16 %v522
        %v571 = vunpack.c.l.b16 %v523
        %v572 = vpack.c.b16 %v565, %v564
        %v573 = vpack.c.b16 %v567, %v566
        %v574 = vpack.c.b16 %v569, %v568
        %v575 = vpack.c.b16 %v571, %v570
        %v596 = vunpack.c.l.b16 %v540
        %v597 = vunpack.c.h.b16 %v540
        %v598 = vunpack.c.l.b16 %v541
        %v599 = vunpack.c.h.b16 %v541
        %v600 = vunpack.c.l.b16 %v542
        %v601 = vunpack.c.h.b16 %v542
        %v602 = vunpack.c.l.b16 %v543
        %v603 = vunpack.c.h.b16 %v543
        %v604 = vunpack.c.l.b16 %v544
        %v605 = vunpack.c.h.b16 %v544
        %v606 = vunpack.c.l.b16 %v545
        %v607 = vunpack.c.h.b16 %v545
        %v608 = vunpack.c.l.b16 %v546
        %v609 = vunpack.c.h.b16 %v546
        %v610 = vunpack.c.l.b16 %v547
        %v611 = vunpack.c.h.b16 %v547
        %v612 = vunpack.c.l.b16 %v548
        %v613 = vunpack.c.h.b16 %v548
        %v614 = vunpack.c.l.b16 %v549
        %v615 = vunpack.c.h.b16 %v549
        %v616 = vunpack.c.l.b16 %v550
        %v617 = vunpack.c.h.b16 %v550
        %v618 = vunpack.c.l.b16 %v551
        %v619 = vunpack.c.h.b16 %v551
        %v620 = vunpack.c.l.b16 %v552
        %v621 = vunpack.c.h.b16 %v552
        %v622 = vunpack.c.l.b16 %v553
        %v623 = vunpack.c.h.b16 %v553
        %v624 = vunpack.c.l.b16 %v554
        %v625 = vunpack.c.h.b16 %v554
        %v626 = vunpack.c.l.b16 %v555
        %v627 = vunpack.c.h.b16 %v555
        %v628 = vpack.c.b16 %v598, %v596
        %v629 = vpack.c.b16 %v599, %v597
        %v630 = vpack.c.b16 %v602, %v600
        %v631 = vpack.c.b16 %v603, %v601
        %v632 = vpack.c.b16 %v606, %v604
        %v633 = vpack.c.b16 %v607, %v605
        %v634 = vpack.c.b16 %v610, %v608
        %v635 = vpack.c.b16 %v611, %v609
        %v636 = vpack.c.b16 %v614, %v612
        %v637 = vpack.c.b16 %v615, %v613
        %v638 = vpack.c.b16 %v618, %v616
        %v639 = vpack.c.b16 %v619, %v617
        %v640 = vpack.c.b16 %v622, %v620
        %v641 = vpack.c.b16 %v623, %v621
        %v642 = vpack.c.b16 %v626, %v624
        %v643 = vpack.c.b16 %v627, %v625
        %660 = vmatpush.bf16.msra.mxu0 %v642
        %661 = vmatpush.bf16.msra.mxu0 %v640
        %662 = vmatpush.bf16.msra.mxu0 %v638
        %663 = vmatpush.bf16.msra.mxu0 %v636
        %664 = vmatpush.bf16.msra.mxu0 %v634
        %665 = vmatpush.bf16.msra.mxu0 %v632
        %666 = vmatpush.bf16.msra.mxu0 %v630
        %667 = vmatpush.bf16.msra.mxu0 %v628
        %668 = vmatmul.bf16.gmra.mxu0 %v572
        %v669 = vpop.f32.mrf.mxu0
        %v670 = vadd.f32 0.0, %v669
        %v671 = vpop.f32.mrf.mxu0
        %v672 = vadd.f32 0.0, %v671
        %673 = vmatmul.bf16.gmra.mxu0 %v573
        %v674 = vpop.f32.mrf.mxu0
        %v675 = vadd.f32 0.0, %v674
        %v676 = vpop.f32.mrf.mxu0
        %v677 = vadd.f32 0.0, %v676
        %678 = vmatmul.bf16.gmra.mxu0 %v574
        %v679 = vpop.f32.mrf.mxu0
        %v680 = vadd.f32 0.0, %v679
        %v681 = vpop.f32.mrf.mxu0
        %v682 = vadd.f32 0.0, %v681
        %683 = vmatmul.bf16.gmra.mxu0 %v575
        %v684 = vpop.f32.mrf.mxu0
        %v685 = vadd.f32 0.0, %v684
        %v686 = vpop.f32.mrf.mxu0
        %v687 = vadd.f32 0.0, %v686
        %688 = vdwg.mxu0
        %689 = vmatpush.bf16.msra.mxu0 %v643
        %690 = vmatpush.bf16.msra.mxu0 %v641
        %691 = vmatpush.bf16.msra.mxu0 %v639
        %692 = vmatpush.bf16.msra.mxu0 %v637
        %693 = vmatpush.bf16.msra.mxu0 %v635
        %694 = vmatpush.bf16.msra.mxu0 %v633
        %695 = vmatpush.bf16.msra.mxu0 %v631
        %696 = vmatpush.bf16.msra.mxu0 %v629
        %697 = vmatmul.bf16.gmra.mxu0 %v572
        %v698 = vpop.f32.mrf.mxu0
        %v699 = vadd.f32 0.0, %v698
        %v700 = vpop.f32.mrf.mxu0
        %v701 = vadd.f32 0.0, %v700
        %702 = vmatmul.bf16.gmra.mxu0 %v573
        %v703 = vpop.f32.mrf.mxu0
        %v704 = vadd.f32 0.0, %v703
        %v705 = vpop.f32.mrf.mxu0
        %v706 = vadd.f32 0.0, %v705
        %707 = vmatmul.bf16.gmra.mxu0 %v574
        %v708 = vpop.f32.mrf.mxu0
        %v709 = vadd.f32 0.0, %v708
        %v710 = vpop.f32.mrf.mxu0
        %v711 = vadd.f32 0.0, %v710
        %712 = vmatmul.bf16.gmra.mxu0 %v575
        %v713 = vpop.f32.mrf.mxu0
        %v714 = vadd.f32 0.0, %v713
        %v715 = vpop.f32.mrf.mxu0
        %v716 = vadd.f32 0.0, %v715
        %717 = vdwg.mxu0
        %v718 = vadd.f32 %v524, %v670
        %v719 = vadd.f32 %v525, %v699
        %v720 = vadd.f32 %v526, %v672
        %v721 = vadd.f32 %v527, %v701
        %v722 = vadd.f32 %v528, %v675
        %v723 = vadd.f32 %v529, %v704
        %v724 = vadd.f32 %v530, %v677
        %v725 = vadd.f32 %v531, %v706
        %v726 = vadd.f32 %v532, %v680
        %v727 = vadd.f32 %v533, %v709
        %v728 = vadd.f32 %v534, %v682
        %v729 = vadd.f32 %v535, %v711
        %v730 = vadd.f32 %v536, %v685
        %v731 = vadd.f32 %v537, %v714
        %v732 = vadd.f32 %v538, %v687
        %v733 = vadd.f32 %v539, %v716
        %734 = vst [vmem:[#allocation2] sm:$0xff] %v718
        %735 = vst [vmem:[#allocation2 + $0x8] sm:$0xff] %v719
        %736 = vst [vmem:[#allocation2 + $0x10] sm:$0xff] %v720
        %737 = vst [vmem:[#allocation2 + $0x18] sm:$0xff] %v721
        %738 = vst [vmem:[#allocation2 + $0x20] sm:$0xff] %v722
        %739 = vst [vmem:[#allocation2 + $0x28] sm:$0xff] %v723
        %740 = vst [vmem:[#allocation2 + $0x30] sm:$0xff] %v724
        %741 = vst [vmem:[#allocation2 + $0x38] sm:$0xff] %v725
        %742 = vst [vmem:[#allocation2 + $0x40] sm:$0xff] %v726
        %743 = vst [vmem:[#allocation2 + $0x48] sm:$0xff] %v727
        %744 = vst [vmem:[#allocation2 + $0x50] sm:$0xff] %v728
        %745 = vst [vmem:[#allocation2 + $0x58] sm:$0xff] %v729
        %746 = vst [vmem:[#allocation2 + $0x60] sm:$0xff] %v730
        %747 = vst [vmem:[#allocation2 + $0x68] sm:$0xff] %v731
        %748 = vst [vmem:[#allocation2 + $0x70] sm:$0xff] %v732
        %749 = vst [vmem:[#allocation2 + $0x78] sm:$0xff] %v733
        %v750 = vld [vmem:[#allocation3] sm:$0xff]
        %v751 = vld [vmem:[#allocation3 + $0x8] sm:$0xff]
        %v752 = vld [vmem:[#allocation3 + $0x10] sm:$0xff]
        %v753 = vld [vmem:[#allocation3 + $0x18] sm:$0xff]
        %v754 = vld [vmem:[#allocation3 + $0x20] sm:$0xff]
        %v755 = vld [vmem:[#allocation3 + $0x28] sm:$0xff]
        %v756 = vld [vmem:[#allocation3 + $0x30] sm:$0xff]
        %v757 = vld [vmem:[#allocation3 + $0x38] sm:$0xff]
        %v758 = vld [vmem:[%s453] sm:$0xf]
        %v759 = vld [vmem:[%s453 + $0x4] sm:$0xf]
        %v760 = vld [vmem:[%s453 + $0x8] sm:$0xf]
        %v761 = vld [vmem:[%s453 + $0xc] sm:$0xf]
        %v762 = vld [vmem:[%s453 + $0x10] sm:$0xf]
        %v763 = vld [vmem:[%s453 + $0x14] sm:$0xf]
        %v764 = vld [vmem:[%s453 + $0x18] sm:$0xf]
        %v765 = vld [vmem:[%s453 + $0x1c] sm:$0xf]
        %v766 = vld [vmem:[%s453 + $0x20] sm:$0xf]
        %v767 = vld [vmem:[%s453 + $0x24] sm:$0xf]
        %v768 = vld [vmem:[%s453 + $0x28] sm:$0xf]
        %v769 = vld [vmem:[%s453 + $0x2c] sm:$0xf]
        %v770 = vld [vmem:[%s453 + $0x30] sm:$0xf]
        %v771 = vld [vmem:[%s453 + $0x34] sm:$0xf]
        %v772 = vld [vmem:[%s453 + $0x38] sm:$0xf]
        %v773 = vld [vmem:[%s453 + $0x3c] sm:$0xf]
        %v790 = vunpack.c.l.b16 %v758
        %v791 = vunpack.c.l.b16 %v759
        %v792 = vunpack.c.l.b16 %v760
        %v793 = vunpack.c.l.b16 %v761
        %v794 = vunpack.c.l.b16 %v762
        %v795 = vunpack.c.l.b16 %v763
        %v796 = vunpack.c.l.b16 %v764
        %v797 = vunpack.c.l.b16 %v765
        %v798 = vunpack.c.l.b16 %v766
        %v799 = vunpack.c.l.b16 %v767
        %v800 = vunpack.c.l.b16 %v768
        %v801 = vunpack.c.l.b16 %v769
        %v802 = vunpack.c.l.b16 %v770
        %v803 = vunpack.c.l.b16 %v771
        %v804 = vunpack.c.l.b16 %v772
        %v805 = vunpack.c.l.b16 %v773
        %v806 = vpack.c.b16 %v791, %v790
        %v807 = vpack.c.b16 %v793, %v792
        %v808 = vpack.c.b16 %v795, %v794
        %v809 = vpack.c.b16 %v797, %v796
        %v810 = vpack.c.b16 %v799, %v798
        %v811 = vpack.c.b16 %v801, %v800
        %v812 = vpack.c.b16 %v803, %v802
        %v813 = vpack.c.b16 %v805, %v804
        %822 = vmatpush.bf16.msra.mxu0 %v813
        %823 = vmatpush.bf16.msra.mxu0 %v812
        %824 = vmatpush.bf16.msra.mxu0 %v811
        %825 = vmatpush.bf16.msra.mxu0 %v810
        %826 = vmatpush.bf16.msra.mxu0 %v809
        %827 = vmatpush.bf16.msra.mxu0 %v808
        %828 = vmatpush.bf16.msra.mxu0 %v807
        %829 = vmatpush.bf16.msra.mxu0 %v806
        %830 = vmatmul.bf16.gmra.mxu0 %v572
        %v831 = vpop.f32.mrf.mxu0
        %v832 = vadd.f32 0.0, %v831
        %v833 = vpop.f32.mrf.mxu0
        %v834 = vadd.f32 0.0, %v833
        %835 = vmatmul.bf16.gmra.mxu0 %v573
        %v836 = vpop.f32.mrf.mxu0
        %v837 = vadd.f32 0.0, %v836
        %v838 = vpop.f32.mrf.mxu0
        %v839 = vadd.f32 0.0, %v838
        %840 = vmatmul.bf16.gmra.mxu0 %v574
        %v841 = vpop.f32.mrf.mxu0
        %v842 = vadd.f32 0.0, %v841
        %v843 = vpop.f32.mrf.mxu0
        %v844 = vadd.f32 0.0, %v843
        %845 = vmatmul.bf16.gmra.mxu0 %v575
        %v846 = vpop.f32.mrf.mxu0
        %v847 = vadd.f32 0.0, %v846
        %v848 = vpop.f32.mrf.mxu0
        %v849 = vadd.f32 0.0, %v848
        %850 = vdwg.mxu0
        %v851 = vadd.f32 %v750, %v832
        %v852 = vadd.f32 %v751, %v834
        %v853 = vadd.f32 %v752, %v837
        %v854 = vadd.f32 %v753, %v839
        %v855 = vadd.f32 %v754, %v842
        %v856 = vadd.f32 %v755, %v844
        %v857 = vadd.f32 %v756, %v847
        %v858 = vadd.f32 %v757, %v849
        %vm859 = vcmask 64512
        %860 = vst.msk [vmem:[#allocation3] sm:$0xff] %vm859, %v851
        %861 = vst.msk [vmem:[#allocation3 + $0x8] sm:$0xff] %vm859, %v852
        %862 = vst.msk [vmem:[#allocation3 + $0x10] sm:$0xff] %vm859, %v853
        %863 = vst.msk [vmem:[#allocation3 + $0x18] sm:$0xff] %vm859, %v854
        %864 = vst.msk [vmem:[#allocation3 + $0x20] sm:$0xff] %vm859, %v855
        %865 = vst.msk [vmem:[#allocation3 + $0x28] sm:$0xff] %vm859, %v856
        %866 = vst.msk [vmem:[#allocation3 + $0x30] sm:$0xff] %vm859, %v857
        %867 = vst.msk [vmem:[#allocation3 + $0x38] sm:$0xff] %vm859, %v858
        %p868 = scmp.eq.s32.totalorder %s29, 1
        // Predicated region
        $region90: #{tpu_custom_call.1} parent=76 // pred_check
          %p869 = pneg %p868
        $region91: #{tpu_custom_call.1} parent=76 // pred_check_branch
          %871 = sbr.rel (%p869) target = $region93
        $region92: #{tpu_custom_call.1} parent=76 // pred_region
          %v872 = vld [vmem:[#allocation3] sm:$0xff]
          %v873 = vld [vmem:[#allocation3 + $0x8] sm:$0xff]
          %v874 = vld [vmem:[#allocation3 + $0x10] sm:$0xff]
          %v875 = vld [vmem:[#allocation3 + $0x18] sm:$0xff]
          %v876 = vld [vmem:[#allocation3 + $0x20] sm:$0xff]
          %v877 = vld [vmem:[#allocation3 + $0x28] sm:$0xff]
          %v878 = vld [vmem:[#allocation3 + $0x30] sm:$0xff]
          %v879 = vld [vmem:[#allocation3 + $0x38] sm:$0xff]
          %v880 = vpack.c.bf16 %v873, %v872
          %v881 = vpack.c.bf16 %v875, %v874
          %v882 = vpack.c.bf16 %v877, %v876
          %v883 = vpack.c.bf16 %v879, %v878
          %v884 = vld [vmem:[%s463] sm:$0xff]
          %v886 = vunpack.c.l.b16 %v884
          %v887 = vunpack.c.h.b16 %v884
          %v888 = vpack.c.b16 %v886, %v886
          %v889 = vpack.c.b16 %v887, %v887
          %v891 = vsel %vm859, %v880, 0
          %v894 = vsel %vm859, %v881, 0
          %v897 = vsel %vm859, %v882, 0
          %v900 = vsel %vm859, %v883, 0
          %vm902 = vcmask 1043456
          %v904 = vsel %vm902, %v888, 0
          %v907 = vsel %vm902, %v889, 0
          %909 = vmatpush.bf16.msra.mxu0 0
          %910 = vmatpush.bf16.msra.mxu0 0
          %911 = vmatpush.bf16.msra.mxu0 0
          %912 = vmatpush.bf16.msra.mxu0 0
          %913 = vmatpush.bf16.msra.mxu0 0
          %914 = vmatpush.bf16.msra.mxu0 0
          %915 = vmatpush.bf16.msra.mxu0 0
          %916 = vmatpush.bf16.msra.mxu0 %v904
          %917 = vmatmul.bf16.gmra.mxu0 %v891
          %v918 = vpop.f32.mrf.mxu0
          %v919 = vadd.f32 0.0, %v918
          %v920 = vpop.f32.mrf.mxu0
          %v921 = vadd.f32 0.0, %v920
          %922 = vmatmul.bf16.gmra.mxu0 %v894
          %v923 = vpop.f32.mrf.mxu0
          %v924 = vadd.f32 0.0, %v923
          %v925 = vpop.f32.mrf.mxu0
          %v926 = vadd.f32 0.0, %v925
          %927 = vmatmul.bf16.gmra.mxu0 %v897
          %v928 = vpop.f32.mrf.mxu0
          %v929 = vadd.f32 0.0, %v928
          %v930 = vpop.f32.mrf.mxu0
          %v931 = vadd.f32 0.0, %v930
          %932 = vmatmul.bf16.gmra.mxu0 %v900
          %v933 = vpop.f32.mrf.mxu0
          %v934 = vadd.f32 0.0, %v933
          %v935 = vpop.f32.mrf.mxu0
          %v936 = vadd.f32 0.0, %v935
          %937 = vdwg.mxu0
          %938 = vmatpush.bf16.msra.mxu0 0
          %939 = vmatpush.bf16.msra.mxu0 0
          %940 = vmatpush.bf16.msra.mxu0 0
          %941 = vmatpush.bf16.msra.mxu0 0
          %942 = vmatpush.bf16.msra.mxu0 0
          %943 = vmatpush.bf16.msra.mxu0 0
          %944 = vmatpush.bf16.msra.mxu0 0
          %945 = vmatpush.bf16.msra.mxu0 %v907
          %946 = vmatmul.bf16.gmra.mxu0 %v891
          %v947 = vpop.f32.mrf.mxu0
          %v948 = vadd.f32 0.0, %v947
          %v949 = vpop.f32.mrf.mxu0
          %v950 = vadd.f32 0.0, %v949
          %951 = vmatmul.bf16.gmra.mxu0 %v894
          %v952 = vpop.f32.mrf.mxu0
          %v953 = vadd.f32 0.0, %v952
          %v954 = vpop.f32.mrf.mxu0
          %v955 = vadd.f32 0.0, %v954
          %956 = vmatmul.bf16.gmra.mxu0 %v897
          %v957 = vpop.f32.mrf.mxu0
          %v958 = vadd.f32 0.0, %v957
          %v959 = vpop.f32.mrf.mxu0
          %v960 = vadd.f32 0.0, %v959
          %961 = vmatmul.bf16.gmra.mxu0 %v900
          %v962 = vpop.f32.mrf.mxu0
          %v963 = vadd.f32 0.0, %v962
          %v964 = vpop.f32.mrf.mxu0
          %v965 = vadd.f32 0.0, %v964
          %966 = vdwg.mxu0
          %v967 = vld [vmem:[#allocation2] sm:$0xff]
          %v968 = vld [vmem:[#allocation2 + $0x8] sm:$0xff]
          %v969 = vld [vmem:[#allocation2 + $0x10] sm:$0xff]
          %v970 = vld [vmem:[#allocation2 + $0x18] sm:$0xff]
          %v971 = vld [vmem:[#allocation2 + $0x20] sm:$0xff]
          %v972 = vld [vmem:[#allocation2 + $0x28] sm:$0xff]
          %v973 = vld [vmem:[#allocation2 + $0x30] sm:$0xff]
          %v974 = vld [vmem:[#allocation2 + $0x38] sm:$0xff]
          %v975 = vld [vmem:[#allocation2 + $0x40] sm:$0xff]
          %v976 = vld [vmem:[#allocation2 + $0x48] sm:$0xff]
          %v977 = vld [vmem:[#allocation2 + $0x50] sm:$0xff]
          %v978 = vld [vmem:[#allocation2 + $0x58] sm:$0xff]
          %v979 = vld [vmem:[#allocation2 + $0x60] sm:$0xff]
          %v980 = vld [vmem:[#allocation2 + $0x68] sm:$0xff]
          %v981 = vld [vmem:[#allocation2 + $0x70] sm:$0xff]
          %v982 = vld [vmem:[#allocation2 + $0x78] sm:$0xff]
          %v983 = vadd.f32 %v967, %v919
          %v984 = vadd.f32 %v968, %v948
          %v985 = vadd.f32 %v969, %v921
          %v986 = vadd.f32 %v970, %v950
          %v987 = vadd.f32 %v971, %v924
          %v988 = vadd.f32 %v972, %v953
          %v989 = vadd.f32 %v973, %v926
          %v990 = vadd.f32 %v974, %v955
          %v991 = vadd.f32 %v975, %v929
          %v992 = vadd.f32 %v976, %v958
          %v993 = vadd.f32 %v977, %v931
          %v994 = vadd.f32 %v978, %v960
          %v995 = vadd.f32 %v979, %v934
          %v996 = vadd.f32 %v980, %v963
          %v997 = vadd.f32 %v981, %v936
          %v998 = vadd.f32 %v982, %v965
          %v999 = vld [vmem:[%s475] sm:$0x3]
          %v1001 = vperm.slane %v999, 0
          %v1002 = vperm.slane %v999, 1
          %v1005 = vadd.f32 %v983, %v1001
          %v1006 = vadd.f32 %v984, %v1002
          %v1007 = vadd.f32 %v985, %v1001
          %v1008 = vadd.f32 %v986, %v1002
          %v1009 = vadd.f32 %v987, %v1001
          %v1010 = vadd.f32 %v988, %v1002
          %v1011 = vadd.f32 %v989, %v1001
          %v1012 = vadd.f32 %v990, %v1002
          %v1013 = vadd.f32 %v991, %v1001
          %v1014 = vadd.f32 %v992, %v1002
          %v1015 = vadd.f32 %v993, %v1001
          %v1016 = vadd.f32 %v994, %v1002
          %v1017 = vadd.f32 %v995, %v1001
          %v1018 = vadd.f32 %v996, %v1002
          %v1019 = vadd.f32 %v997, %v1001
          %v1020 = vadd.f32 %v998, %v1002
          %1021 = vst [vmem:[%s441] sm:$0xff] %v1005
          %1022 = vst [vmem:[%s441 + $0x8] sm:$0xff] %v1006
          %1023 = vst [vmem:[%s441 + $0x10] sm:$0xff] %v1007
          %1024 = vst [vmem:[%s441 + $0x18] sm:$0xff] %v1008
          %1025 = vst [vmem:[%s441 + $0x20] sm:$0xff] %v1009
          %1026 = vst [vmem:[%s441 + $0x28] sm:$0xff] %v1010
          %1027 = vst [vmem:[%s441 + $0x30] sm:$0xff] %v1011
          %1028 = vst [vmem:[%s441 + $0x38] sm:$0xff] %v1012
          %1029 = vst [vmem:[%s441 + $0x40] sm:$0xff] %v1013
          %1030 = vst [vmem:[%s441 + $0x48] sm:$0xff] %v1014
          %1031 = vst [vmem:[%s441 + $0x50] sm:$0xff] %v1015
          %1032 = vst [vmem:[%s441 + $0x58] sm:$0xff] %v1016
          %1033 = vst [vmem:[%s441 + $0x60] sm:$0xff] %v1017
          %1034 = vst [vmem:[%s441 + $0x68] sm:$0xff] %v1018
          %1035 = vst [vmem:[%s441 + $0x70] sm:$0xff] %v1019
          %1036 = vst [vmem:[%s441 + $0x78] sm:$0xff] %v1020
        $region93: #{tpu_custom_call.1} parent=76 // pred_fallthru
          _
        %s1037 = sand.u32 %s185, 1
        %s1038 = scalar_lea.sflag [#allocation7], %s1037
        %s1039 = sand.u32 %s185, 1
        %s1040 = smul.addr %s1039, 128
        %s1041 = scalar_lea.vmem [#allocation8], %s1040
        // Predicated region
        $region94: #{tpu_custom_call.1} parent=76 // pred_check
          %p1042 = pneg %p195
        $region95: #{tpu_custom_call.1} parent=76 // pred_check_branch
          %1044 = sbr.rel (%p1042) target = $region97
        $region96: #{tpu_custom_call.1} parent=76 // pred_region
          %s1045 = smul.u32 8, %s27
          %s1046 = smul.u32 2, %s28
          %s1047 = ssub.s32 3, %s1046
          %p1048 = scmp.lt.s32.totalorder %s1047, 2
          %s1049 = scalar_select %p1048, %s1047, 2
          %s1050 = smul.u32 64, %s1049
          %s1051 = ssub.s32 128, %s1050
          %s1052 = sshll.u32 %s1051, 4
          %1053 = vsyncadd %s1038, %s1052
          %p1054 = scmp.ne.s32.totalorder 0, %s1050
          %s1055 = smul.addr %s1045, 3
          %s1056 = sadd.s32 %s1046, %s1055
          %s1057 = smul.addr %s1056, 8
          %s1058 = scalar_lea.hbm %s5, %s1057
          %s1059 = smul.u32 %s1049, 8
          %s1060 = smul.u32 %s1059, 8
          %s1061 = sshll.u32 %s1041, 4
          %s1062 = int_to_ptr.vmem [resolvable:$true] %s1061
          %s1063 = sshll.u32 %s1058, 4
          %s1064 = int_to_ptr.hbm [resolvable:$true] %s1063
          %s1065 = sshll.u32 %s1060, 4
          %1069 = dma.vmem_to_hbm [thread:$0]  (%p1054), %s1062, %s1065, %s1064, %s1038, 256, 384, %s1059
        $region97: #{tpu_custom_call.1} parent=76 // pred_fallthru
          _
      $region77: #{tpu_custom_call.1} parent=5 // pred_fallthru
        _
      %p1070 = scmp.le.s32.totalorder 2, %s17
      // Predicated region
      $region98: #{tpu_custom_call.1} parent=5 // pred_check
        %p1071 = pneg %p1070
      $region99: #{tpu_custom_call.1} parent=5 // pred_check_branch
        %1073 = sbr.rel (%p1071) target = $region101
      $region100: #{tpu_custom_call.1} parent=5 // pred_region
        %s1074 = ssub.s32 %s17, 2
        // Predicated region
        $region102: #{tpu_custom_call.1} parent=100 // pred_check
          %p1075 = pneg %p201
        $region103: #{tpu_custom_call.1} parent=100 // pred_check_branch
          %1077 = sbr.rel (%p1075) target = $region105
        $region104: #{tpu_custom_call.1} parent=100 // pred_region
          %s1078 = sand.u32 %s186, 1
          %s1079 = scalar_lea.sflag [#allocation7], %s1078
          %s1080 = sand.u32 %s186, 1
          %s1081 = smul.addr %s1080, 128
          %s1082 = scalar_lea.vmem [#allocation8], %s1081
          %1084 = dma.done %s1079, 2048
        $region105: #{tpu_custom_call.1} parent=100 // pred_fallthru
          _
      $region101: #{tpu_custom_call.1} parent=5 // pred_fallthru
        _
    $region6: #{tpu_custom_call.1} parent=1 // loop_footer
      %s21 = sadd.s32 1, %s17
    $region7: #{tpu_custom_call.1} parent=1 // loop_footer_branch
      %16 = sbr.rel target = $region3
    $region8: #{tpu_custom_call.1} parent=1 // loop_exit
      _
    %1085 = vsyncpa [#allocation6], 1
    %s1086 = scalar_lea.sflag [#allocation6], 1
    %1087 = vsyncpa %s1086, 1
    %1088 = vsyncpa [#allocation7], 1
    %s1089 = scalar_lea.sflag [#allocation7], 1
    %1090 = vsyncpa %s1089, 1

</llo_original>
